<compile_context>
chip_gen: v7x
topology: tpu7x:2x2x1
jax: 0.10.0
libtpu: 0.0.40
codegen_flags: <defaults>
</compile_context>

<pallas_src>
import functools

import jax
import jax.numpy as jnp
from jax import lax
from jax.experimental import pallas as pl
from jax.experimental.pallas import tpu as pltpu


def _softmax_loss_kernel(x_ref, k_ref, tcol_ref, out_ref,
                         *, num_classes, alpha, beta):
    x = x_ref[...]                      # (N, D)  f32
    w = k_ref[...]                      # (D, CP) f32, zero-padded columns
    t_col = tcol_ref[...]               # (N, 1)  int32

    N, _ = x.shape
    CP = w.shape[1]

    # --- MXU work issued first: raw logits and self-similarity ------------
    xw = jnp.dot(x, w, preferred_element_type=jnp.float32)          # (N, CP)
    sim = lax.dot_general(x, x, (((1,), (1,)), ((), ())),
                          preferred_element_type=jnp.float32)        # (N, N)

    # --- inverse column norms (VPU/XLU/EUP; overlaps with the MXU pushes) -
    col_sq = jnp.sum(w * w, axis=0, keepdims=True)                   # (1, CP)
    inv_norm = jnp.where(col_sq > 0.0, lax.rsqrt(col_sq), 0.0)       # padded cols -> 0

    # cos_theta = clamp(inputs @ l2_norm(kernel, axis=0), -1, 1)
    cos = jnp.clip(xw * inv_norm, -1.0, 1.0)                         # (N, CP)

    col_ids = lax.broadcasted_iota(jnp.int32, (N, CP), 1)            # (N, CP)
    onehot = col_ids == t_col                                        # scatter_(1,label,1)
    valid = col_ids < num_classes                                    # mask padded classes

    # output = cos_theta; output[onehot] = cos_theta - beta; output *= alpha
    out_logits = jnp.where(onehot, cos - beta, cos) * alpha          # (N, CP)
    neg_big = jnp.float32(-1e30)
    logits = jnp.where(valid, out_logits, neg_big)

    # --- cross entropy per row --------------------------------------------
    row_max = jnp.max(logits, axis=1, keepdims=True)                 # (N, 1)
    expv = jnp.exp(logits - row_max)
    lse = jnp.log(jnp.sum(expv, axis=1, keepdims=True)) + row_max
    tgt_logit = jnp.sum(jnp.where(onehot, out_logits, 0.0), axis=1, keepdims=True)
    loss_row = lse - tgt_logit                                       # (N, 1)

    # --- pred = argmax(output, dim=1); correct indicator -------------------
    is_max = logits == row_max
    pred = jnp.min(jnp.where(is_max, col_ids, CP), axis=1, keepdims=True)  # first argmax
    correct = (pred == t_col).astype(jnp.float32)                    # (N, 1)

    # --- same-class mask from the one-hot matrix (MXU; no targets-row DMA) -
    ohf = onehot.astype(jnp.float32)
    same_f = lax.dot_general(ohf, ohf, (((1,), (1,)), ((), ())),
                             preferred_element_type=jnp.float32)     # (N, N), exactly 0/1
    posf = jnp.where(sim < 1.0, same_f, 0.0)   # masked_select(pos, pos < 1)
    negf = 1.0 - same_f                        # targets != targets[i]

    pos_cnt = jnp.sum(posf, axis=1, keepdims=True)
    neg_cnt = jnp.sum(negf, axis=1, keepdims=True)
    pos_sum = jnp.sum(sim * posf, axis=1, keepdims=True)
    neg_sum = jnp.sum(sim * negf, axis=1, keepdims=True)
    # torch.mean of an empty selection is NaN; 0/0 reproduces that and is
    # deliberately propagated through the batch mean, like the reference.
    mean_pos_row = pos_sum / pos_cnt                                 # (N, 1)
    mean_neg_row = neg_sum / neg_cnt                                 # (N, 1)

    # --- fold the batch mean into the kernel (one sublane reduce each) -----
    inv_n = jnp.float32(1.0 / N)
    loss_mean = jnp.sum(loss_row, axis=0, keepdims=True) * inv_n     # (1, 1)
    prec = jnp.sum(correct, axis=0, keepdims=True) * inv_n
    mean_pos = jnp.sum(mean_pos_row, axis=0, keepdims=True) * inv_n
    mean_neg = jnp.sum(mean_neg_row, axis=0, keepdims=True) * inv_n

    # --- pack scalars into a single lane-dense (1, 128) output row ---------
    ocol = lax.broadcasted_iota(jnp.int32, out_ref.shape, 1)         # (1, 128)
    out_ref[...] = jnp.where(
        ocol == 0, loss_mean,
        jnp.where(ocol == 1, prec,
                  jnp.where(ocol == 2, mean_pos,
                            jnp.where(ocol == 3, mean_neg, 0.0))))


def pad_kernel_weights(kernel_w):
    """Zero-pad the class axis to a multiple of 128 lanes (done once at setup)."""
    kernel_w = kernel_w.astype(jnp.float32)
    d, c = kernel_w.shape
    cp = ((c + 127) // 128) * 128
    k_pad = jnp.zeros((d, cp), jnp.float32).at[:, :c].set(kernel_w)
    return k_pad, c


@functools.partial(jax.jit, static_argnames=("num_classes", "alpha", "beta"))
def softmax_loss_forward(inputs, targets, k_pad, *, num_classes,
                         alpha=10.0, beta=2.0):
    """Returns (loss, prec, mean_pos_sim, mean_neg_sim) like SoftmaxLoss.forward."""
    inputs = inputs.astype(jnp.float32)
    n, d = inputs.shape
    cp = k_pad.shape[1]
    t_col = targets.reshape(n, 1).astype(jnp.int32)

    kern = functools.partial(_softmax_loss_kernel, num_classes=int(num_classes),
                             alpha=float(alpha), beta=float(beta))

    # Advisory cost hint so XLA can overlap this tiny call with neighbors.
    flops = 2 * n * d * cp + 2 * n * d * n + 2 * n * cp * n
    transcendentals = n * cp + cp            # exp + rsqrt
    bytes_accessed = 4 * (n * d + d * cp + n + 128)

    stats = pl.pallas_call(
        kern,
        out_shape=jax.ShapeDtypeStruct((1, 128), jnp.float32),
        in_specs=[pl.BlockSpec(memory_space=pltpu.MemorySpace.VMEM)] * 3,
        out_specs=pl.BlockSpec(memory_space=pltpu.MemorySpace.VMEM),
        cost_estimate=pl.CostEstimate(flops=flops,
                                      transcendentals=transcendentals,
                                      bytes_accessed=bytes_accessed),
    )(inputs, k_pad, t_col)

    return stats[0, 0], stats[0, 1], stats[0, 2], stats[0, 3]


if __name__ == "__main__":
    key = jax.random.PRNGKey(0)
    k_w, k_x = jax.random.split(key)

    D, C, N = 512, 98, 8

    # Deterministic parameter init mirroring:
    #   Tensor(512, 98).uniform_(-1, 1).renorm_(2, 1, 1e-05).mul_(100000.0)
    kernel_w = jax.random.uniform(k_w, (D, C), jnp.float32, minval=-1.0, maxval=1.0)
    col_norm = jnp.sqrt(jnp.sum(kernel_w * kernel_w, axis=0, keepdims=True))
    kernel_w = kernel_w * jnp.minimum(1e5, 1.0 / col_norm)

    # Hoisted out of the per-call path: pad the class axis once.
    k_pad, num_classes = pad_kernel_weights(kernel_w)
    k_pad = jax.block_until_ready(k_pad)

    # Example embeddings (L2-normalized rows, as this loss is typically fed),
    # and labels with repeated classes so pos/neg similarity sets are non-empty.
    x = jax.random.normal(k_x, (N, D), jnp.float32)
    x = x / jnp.sqrt(jnp.sum(x * x, axis=1, keepdims=True))
    targets = jnp.array([3, 3, 17, 17, 42, 42, 96, 96], dtype=jnp.int32)

    loss, prec, mean_pos, mean_neg = jax.block_until_ready(
        softmax_loss_forward(x, targets, k_pad, num_classes=num_classes,
                             alpha=10.0, beta=2.0))

    # TODO(synk): per-row torch.sort() in the reference only reorders values before
    # a mean and has no effect on outputs, so it is intentionally omitted.
    print("KERNEL_OK")
</pallas_src>

<mosaic_0001>
module attributes {stable_mosaic.version = 11 : i64} {
  func.func @_softmax_loss_kernel(%arg0: memref<8x512xf32, #tpu.memory_space<vmem>>, %arg1: memref<512x128xf32, #tpu.memory_space<vmem>>, %arg2: memref<8x1xi32, #tpu.memory_space<vmem>>, %arg3: memref<1x128xf32, #tpu.memory_space<vmem>>) attributes {dimension_semantics = [], scalar_prefetch = 0 : i64, scratch_operands = 0 : i64, tpu.core_type = #tpu.core_type<tc>} {
    %c0 = arith.constant 0 : index
    %c0_0 = arith.constant 0 : index
    %0 = vector.load %arg0[%c0, %c0_0] : memref<8x512xf32, #tpu.memory_space<vmem>>, vector<8x512xf32>
    %c0_1 = arith.constant 0 : index
    %c0_2 = arith.constant 0 : index
    %1 = vector.load %arg1[%c0_1, %c0_2] : memref<512x128xf32, #tpu.memory_space<vmem>>, vector<512x128xf32>
    %c0_3 = arith.constant 0 : index
    %c0_4 = arith.constant 0 : index
    %2 = vector.load %arg2[%c0_3, %c0_4] : memref<8x1xi32, #tpu.memory_space<vmem>>, vector<8x1xi32>
    %cst = arith.constant dense<0.000000e+00> : vector<8x128xf32>
    %3 = tpu.matmul %0, %1, %cst {dimension_numbers = #tpu.dot_dimension_numbers<[1], [0], [0], [1], [0, 0, 1, 1], [], []>} : vector<8x512xf32>, vector<512x128xf32>, vector<8x128xf32> -> vector<8x128xf32>
    %cst_5 = arith.constant dense<0.000000e+00> : vector<8x8xf32>
    %4 = tpu.matmul %0, %0, %cst_5 {dimension_numbers = #tpu.dot_dimension_numbers<[1], [1], [0], [0], [0, 0, 1, 0], [], []>} : vector<8x512xf32>, vector<8x512xf32>, vector<8x8xf32> -> vector<8x8xf32>
    %5 = arith.mulf %1, %1 : vector<512x128xf32>
    %cst_6 = arith.constant dense<0.000000e+00> : vector<128xf32>
    %6 = vector.multi_reduction <add>, %5, %cst_6 [0] : vector<512x128xf32> to vector<128xf32>
    %7 = vector.shape_cast %6 : vector<128xf32> to vector<1x128xf32>
    %cst_7 = arith.constant 0.000000e+00 : f32
    %8 = vector.broadcast %cst_7 : f32 to vector<1x128xf32>
    %9 = arith.cmpf ogt, %7, %8 : vector<1x128xf32>
    %10 = math.rsqrt %7 : vector<1x128xf32>
    %cst_8 = arith.constant 0.000000e+00 : f32
    %11 = vector.broadcast %cst_8 : f32 to vector<1x128xf32>
    %12 = arith.select %9, %10, %11 : vector<1x128xi1>, vector<1x128xf32>
    %13 = vector.broadcast %12 : vector<1x128xf32> to vector<8x128xf32>
    %14 = arith.mulf %3, %13 : vector<8x128xf32>
    %cst_9 = arith.constant -1.000000e+00 : f32
    %cst_10 = arith.constant 1.000000e+00 : f32
    %15 = vector.broadcast %cst_9 : f32 to vector<8x128xf32>
    %16 = arith.maximumf %15, %14 : vector<8x128xf32>
    %17 = vector.broadcast %cst_10 : f32 to vector<8x128xf32>
    %18 = arith.minimumf %17, %16 : vector<8x128xf32>
    %19 = tpu.iota {dimensions = array<i32: 1>} : vector<8x128xi32>
    %20 = vector.broadcast %2 : vector<8x1xi32> to vector<8x128xi32>
    %21 = arith.cmpi eq, %19, %20 : vector<8x128xi32>
    %c98_i32 = arith.constant 98 : i32
    %22 = vector.broadcast %c98_i32 : i32 to vector<8x128xi32>
    %23 = arith.cmpi slt, %19, %22 : vector<8x128xi32>
    %cst_11 = arith.constant 2.000000e+00 : f32
    %24 = vector.broadcast %cst_11 : f32 to vector<8x128xf32>
    %25 = arith.subf %18, %24 : vector<8x128xf32>
    %26 = arith.select %21, %25, %18 : vector<8x128xi1>, vector<8x128xf32>
    %cst_12 = arith.constant 1.000000e+01 : f32
    %27 = vector.broadcast %cst_12 : f32 to vector<8x128xf32>
    %28 = arith.mulf %26, %27 : vector<8x128xf32>
    %cst_13 = arith.constant -1.000000e+30 : f32
    %29 = vector.broadcast %cst_13 : f32 to vector<8x128xf32>
    %30 = arith.select %23, %28, %29 : vector<8x128xi1>, vector<8x128xf32>
    %cst_14 = arith.constant dense<0xFF800000> : vector<8xf32>
    %31 = vector.multi_reduction <maximumf>, %30, %cst_14 [1] : vector<8x128xf32> to vector<8xf32>
    %32 = vector.shape_cast %31 : vector<8xf32> to vector<8x1xf32>
    %33 = vector.broadcast %32 : vector<8x1xf32> to vector<8x128xf32>
    %34 = arith.subf %30, %33 : vector<8x128xf32>
    %35 = math.exp %34 : vector<8x128xf32>
    %cst_15 = arith.constant dense<0.000000e+00> : vector<8xf32>
    %36 = vector.multi_reduction <add>, %35, %cst_15 [1] : vector<8x128xf32> to vector<8xf32>
    %37 = vector.shape_cast %36 : vector<8xf32> to vector<8x1xf32>
    %38 = math.log %37 : vector<8x1xf32>
    %39 = arith.addf %38, %32 : vector<8x1xf32>
    %cst_16 = arith.constant 0.000000e+00 : f32
    %40 = vector.broadcast %cst_16 : f32 to vector<8x128xf32>
    %41 = arith.select %21, %28, %40 : vector<8x128xi1>, vector<8x128xf32>
    %cst_17 = arith.constant dense<0.000000e+00> : vector<8xf32>
    %42 = vector.multi_reduction <add>, %41, %cst_17 [1] : vector<8x128xf32> to vector<8xf32>
    %43 = vector.shape_cast %42 : vector<8xf32> to vector<8x1xf32>
    %44 = arith.subf %39, %43 : vector<8x1xf32>
    %45 = vector.broadcast %32 : vector<8x1xf32> to vector<8x128xf32>
    %46 = arith.cmpf oeq, %30, %45 : vector<8x128xf32>
    %c128_i32 = arith.constant 128 : i32
    %47 = vector.broadcast %c128_i32 : i32 to vector<8x128xi32>
    %48 = arith.select %46, %19, %47 : vector<8x128xi1>, vector<8x128xi32>
    %cst_18 = arith.constant dense<2147483647> : vector<8xi32>
    %49 = vector.multi_reduction <minsi>, %48, %cst_18 [1] : vector<8x128xi32> to vector<8xi32>
    %50 = vector.shape_cast %49 : vector<8xi32> to vector<8x1xi32>
    %51 = arith.cmpi eq, %50, %2 : vector<8x1xi32>
    %52 = arith.extui %51 : vector<8x1xi1> to vector<8x1xi32>
    %53 = arith.sitofp %52 : vector<8x1xi32> to vector<8x1xf32>
    %54 = arith.extui %21 : vector<8x128xi1> to vector<8x128xi32>
    %55 = arith.sitofp %54 : vector<8x128xi32> to vector<8x128xf32>
    %cst_19 = arith.constant dense<0.000000e+00> : vector<8x8xf32>
    %56 = tpu.matmul %55, %55, %cst_19 {dimension_numbers = #tpu.dot_dimension_numbers<[1], [1], [0], [0], [0, 0, 1, 0], [], []>} : vector<8x128xf32>, vector<8x128xf32>, vector<8x8xf32> -> vector<8x8xf32>
    %cst_20 = arith.constant 1.000000e+00 : f32
    %57 = vector.broadcast %cst_20 : f32 to vector<8x8xf32>
    %58 = arith.cmpf olt, %4, %57 : vector<8x8xf32>
    %cst_21 = arith.constant 0.000000e+00 : f32
    %59 = vector.broadcast %cst_21 : f32 to vector<8x8xf32>
    %60 = arith.select %58, %56, %59 : vector<8x8xi1>, vector<8x8xf32>
    %cst_22 = arith.constant 1.000000e+00 : f32
    %61 = vector.broadcast %cst_22 : f32 to vector<8x8xf32>
    %62 = arith.subf %61, %56 : vector<8x8xf32>
    %cst_23 = arith.constant dense<0.000000e+00> : vector<8xf32>
    %63 = vector.multi_reduction <add>, %60, %cst_23 [1] : vector<8x8xf32> to vector<8xf32>
    %64 = vector.shape_cast %63 : vector<8xf32> to vector<8x1xf32>
    %cst_24 = arith.constant dense<0.000000e+00> : vector<8xf32>
    %65 = vector.multi_reduction <add>, %62, %cst_24 [1] : vector<8x8xf32> to vector<8xf32>
    %66 = vector.shape_cast %65 : vector<8xf32> to vector<8x1xf32>
    %67 = arith.mulf %4, %60 : vector<8x8xf32>
    %cst_25 = arith.constant dense<0.000000e+00> : vector<8xf32>
    %68 = vector.multi_reduction <add>, %67, %cst_25 [1] : vector<8x8xf32> to vector<8xf32>
    %69 = vector.shape_cast %68 : vector<8xf32> to vector<8x1xf32>
    %70 = arith.mulf %4, %62 : vector<8x8xf32>
    %cst_26 = arith.constant dense<0.000000e+00> : vector<8xf32>
    %71 = vector.multi_reduction <add>, %70, %cst_26 [1] : vector<8x8xf32> to vector<8xf32>
    %72 = vector.shape_cast %71 : vector<8xf32> to vector<8x1xf32>
    %73 = arith.divf %69, %64 : vector<8x1xf32>
    %74 = arith.divf %72, %66 : vector<8x1xf32>
    %cst_27 = arith.constant dense<0.000000e+00> : vector<1xf32>
    %75 = vector.multi_reduction <add>, %44, %cst_27 [0] : vector<8x1xf32> to vector<1xf32>
    %76 = vector.shape_cast %75 : vector<1xf32> to vector<1x1xf32>
    %cst_28 = arith.constant 1.250000e-01 : f32
    %77 = vector.broadcast %cst_28 : f32 to vector<1x1xf32>
    %78 = arith.mulf %76, %77 : vector<1x1xf32>
    %cst_29 = arith.constant dense<0.000000e+00> : vector<1xf32>
    %79 = vector.multi_reduction <add>, %53, %cst_29 [0] : vector<8x1xf32> to vector<1xf32>
    %80 = vector.shape_cast %79 : vector<1xf32> to vector<1x1xf32>
    %cst_30 = arith.constant 1.250000e-01 : f32
    %81 = vector.broadcast %cst_30 : f32 to vector<1x1xf32>
    %82 = arith.mulf %80, %81 : vector<1x1xf32>
    %cst_31 = arith.constant dense<0.000000e+00> : vector<1xf32>
    %83 = vector.multi_reduction <add>, %73, %cst_31 [0] : vector<8x1xf32> to vector<1xf32>
    %84 = vector.shape_cast %83 : vector<1xf32> to vector<1x1xf32>
    %cst_32 = arith.constant 1.250000e-01 : f32
    %85 = vector.broadcast %cst_32 : f32 to vector<1x1xf32>
    %86 = arith.mulf %84, %85 : vector<1x1xf32>
    %cst_33 = arith.constant dense<0.000000e+00> : vector<1xf32>
    %87 = vector.multi_reduction <add>, %74, %cst_33 [0] : vector<8x1xf32> to vector<1xf32>
    %88 = vector.shape_cast %87 : vector<1xf32> to vector<1x1xf32>
    %cst_34 = arith.constant 1.250000e-01 : f32
    %89 = vector.broadcast %cst_34 : f32 to vector<1x1xf32>
    %90 = arith.mulf %88, %89 : vector<1x1xf32>
    %91 = tpu.iota {dimensions = array<i32: 1>} : vector<1x128xi32>
    %c0_i32 = arith.constant 0 : i32
    %92 = vector.broadcast %c0_i32 : i32 to vector<1x128xi32>
    %93 = arith.cmpi eq, %91, %92 : vector<1x128xi32>
    %c1_i32 = arith.constant 1 : i32
    %94 = vector.broadcast %c1_i32 : i32 to vector<1x128xi32>
    %95 = arith.cmpi eq, %91, %94 : vector<1x128xi32>
    %c2_i32 = arith.constant 2 : i32
    %96 = vector.broadcast %c2_i32 : i32 to vector<1x128xi32>
    %97 = arith.cmpi eq, %91, %96 : vector<1x128xi32>
    %c3_i32 = arith.constant 3 : i32
    %98 = vector.broadcast %c3_i32 : i32 to vector<1x128xi32>
    %99 = arith.cmpi eq, %91, %98 : vector<1x128xi32>
    %cst_35 = arith.constant 0.000000e+00 : f32
    %100 = vector.shape_cast %90 : vector<1x1xf32> to vector<1x1xf32>
    %101 = vector.broadcast %100 : vector<1x1xf32> to vector<1x128xf32>
    %102 = vector.broadcast %cst_35 : f32 to vector<1x128xf32>
    %103 = arith.select %99, %101, %102 : vector<1x128xi1>, vector<1x128xf32>
    %104 = vector.shape_cast %86 : vector<1x1xf32> to vector<1x1xf32>
    %105 = vector.broadcast %104 : vector<1x1xf32> to vector<1x128xf32>
    %106 = arith.select %97, %105, %103 : vector<1x128xi1>, vector<1x128xf32>
    %107 = vector.shape_cast %82 : vector<1x1xf32> to vector<1x1xf32>
    %108 = vector.broadcast %107 : vector<1x1xf32> to vector<1x128xf32>
    %109 = arith.select %95, %108, %106 : vector<1x128xi1>, vector<1x128xf32>
    %110 = vector.shape_cast %78 : vector<1x1xf32> to vector<1x1xf32>
    %111 = vector.broadcast %110 : vector<1x1xf32> to vector<1x128xf32>
    %112 = arith.select %93, %111, %109 : vector<1x128xi1>, vector<1x128xf32>
    %c0_36 = arith.constant 0 : index
    %c0_37 = arith.constant 0 : index
    %113 = vector.load %arg3[%c0_36, %c0_37] : memref<1x128xf32, #tpu.memory_space<vmem>>, vector<1x128xf32>
    tpu.vector_store %arg3[%c0_36, %c0_37], %112 {strides = array<i32>} : memref<1x128xf32, #tpu.memory_space<vmem>>, vector<1x128xf32>,
    return
  }
}

</mosaic_0001>

<llo_original>
// kernel: softmax_loss_forward.1
$region0: #{softmax_loss_forward.1}
  #allocation0 [shape = 'u32[]', space=smem, size = 0x4, offset = 0x4, fixed_abs, tag = 'smem constant byte address 0x4 - core index']
  #allocation1 [shape = 'u32[144,128]{1,0:T(1,128)}', space=vmem, size = 0x12000, scoped, tag = 'internal scratch']
  %s0 = inlined_call_operand.hbm [shape: f32[8,512], index: 0, kind: input, shape index: {}]
  %s1 = inlined_call_operand.hbm [shape: f32[512,128], index: 1, kind: input, shape index: {}]
  %s2 = inlined_call_operand.vmem [shape: s32[8,1], index: 2, kind: input, shape index: {}]
  %s3 = inlined_call_operand.vmem [shape: f32[1,128], index: 3, kind: output, shape index: {}]
  %s4 = sld [smem:[#allocation0]]
  $region30: #{softmax_loss_forward.1} parent=0
    _
  %s6 = ssub.s32 1, %s4
  %s7 = scalar_select 0, %s6, %s4
  $region1: #{softmax_loss_forward.1} parent=0
    #allocation2 [shape = 'u8[16384]{0}', space=vmem, size = 0x4000, scoped, tag = 'input window, operand 0, single buffered']
    #allocation3 [shape = 's32[1]{0}', space=sflag, size = 0x4, scoped, tag = 'scoped memory for softmax_loss_forward.1']
    #allocation4 [shape = 'u8[262144]{0}', space=vmem, size = 0x40000, scoped, tag = 'input window, operand 1, single buffered']
    #allocation5 [shape = 's32[1]{0}', space=sflag, size = 0x4, scoped, tag = 'scoped memory for softmax_loss_forward.1']
    %8 = vsyncpa [#allocation3], 0
    %9 = vsyncpa [#allocation5], 0
    // Predicated region
    $region2: #{softmax_loss_forward.1} parent=1 // pred_check
      _
    $region3: #{softmax_loss_forward.1} parent=1 // pred_check_branch
      %11 = sbr.rel (0) target = $region5
    $region4: #{softmax_loss_forward.1} parent=1 // pred_region
      %s13 = ssub.s32 512, 512
      %14 = vsyncadd [#allocation3], %s13
      %s16 = sshll.u32 [#allocation2], 4
      %s17 = int_to_ptr.vmem [resolvable:$true] %s16
      %19 = dma.hbm_to_vmem [thread:$0]  %s0, 512, %s17, [#allocation3]
    $region5: #{softmax_loss_forward.1} parent=1 // pred_fallthru
      _
    // Predicated region
    $region6: #{softmax_loss_forward.1} parent=1 // pred_check
      _
    $region7: #{softmax_loss_forward.1} parent=1 // pred_check_branch
      %21 = sbr.rel (0) target = $region9
    $region8: #{softmax_loss_forward.1} parent=1 // pred_region
      %s23 = ssub.s32 8192, 8192
      %24 = vsyncadd [#allocation5], %s23
      %s25 = sshll.u32 [#allocation4], 4
      %s26 = int_to_ptr.vmem [resolvable:$true] %s25
      %31 = dma.hbm_to_vmem [thread:$0]  %s1, 8192, %s26, [#allocation5], 128, 128, 8
    $region9: #{softmax_loss_forward.1} parent=1 // pred_fallthru
      _
    // Predicated region
    $region10: #{softmax_loss_forward.1} parent=1 // pred_check
      _
    $region11: #{softmax_loss_forward.1} parent=1 // pred_check_branch
      %33 = sbr.rel (0) target = $region13
    $region12: #{softmax_loss_forward.1} parent=1 // pred_region
      _
    $region13: #{softmax_loss_forward.1} parent=1 // pred_fallthru
      _
    // Predicated region
    $region14: #{softmax_loss_forward.1} parent=1 // pred_check
      _
    $region15: #{softmax_loss_forward.1} parent=1 // pred_check_branch
      %35 = sbr.rel (0) target = $region17
    $region16: #{softmax_loss_forward.1} parent=1 // pred_region
      %36 = dma.done [#allocation3], 512
    $region17: #{softmax_loss_forward.1} parent=1 // pred_fallthru
      _
    // Predicated region
    $region18: #{softmax_loss_forward.1} parent=1 // pred_check
      _
    $region19: #{softmax_loss_forward.1} parent=1 // pred_check_branch
      %38 = sbr.rel (0) target = $region21
    $region20: #{softmax_loss_forward.1} parent=1 // pred_region
      %39 = dma.done [#allocation5], 8192
    $region21: #{softmax_loss_forward.1} parent=1 // pred_fallthru
      _
    %v40 = vld [vmem:[#allocation2] sm:$0xff]
    %v41 = vld [vmem:[#allocation2 + $0x8] sm:$0xff]
    %v42 = vld [vmem:[#allocation2 + $0x10] sm:$0xff]
    %v43 = vld [vmem:[#allocation2 + $0x18] sm:$0xff]
    %v44 = vld [vmem:[#allocation4] sm:$0xff]
    %v45 = vld [vmem:[#allocation4 + $0x8] sm:$0xff]
    %v46 = vld [vmem:[#allocation4 + $0x10] sm:$0xff]
    %v47 = vld [vmem:[#allocation4 + $0x18] sm:$0xff]
    %v48 = vld [vmem:[#allocation4 + $0x20] sm:$0xff]
    %v49 = vld [vmem:[#allocation4 + $0x28] sm:$0xff]
    %v50 = vld [vmem:[#allocation4 + $0x30] sm:$0xff]
    %v51 = vld [vmem:[#allocation4 + $0x38] sm:$0xff]
    %v52 = vld [vmem:[#allocation4 + $0x40] sm:$0xff]
    %v53 = vld [vmem:[#allocation4 + $0x48] sm:$0xff]
    %v54 = vld [vmem:[#allocation4 + $0x50] sm:$0xff]
    %v55 = vld [vmem:[#allocation4 + $0x58] sm:$0xff]
    %v56 = vld [vmem:[#allocation4 + $0x60] sm:$0xff]
    %v57 = vld [vmem:[#allocation4 + $0x68] sm:$0xff]
    %v58 = vld [vmem:[#allocation4 + $0x70] sm:$0xff]
    %v59 = vld [vmem:[#allocation4 + $0x78] sm:$0xff]
    %v60 = vld [vmem:[#allocation4 + $0x80] sm:$0xff]
    %v61 = vld [vmem:[#allocation4 + $0x88] sm:$0xff]
    %v62 = vld [vmem:[#allocation4 + $0x90] sm:$0xff]
    %v63 = vld [vmem:[#allocation4 + $0x98] sm:$0xff]
    %v64 = vld [vmem:[#allocation4 + $0xa0] sm:$0xff]
    %v65 = vld [vmem:[#allocation4 + $0xa8] sm:$0xff]
    %v66 = vld [vmem:[#allocation4 + $0xb0] sm:$0xff]
    %v67 = vld [vmem:[#allocation4 + $0xb8] sm:$0xff]
    %v68 = vld [vmem:[#allocation4 + $0xc0] sm:$0xff]
    %v69 = vld [vmem:[#allocation4 + $0xc8] sm:$0xff]
    %v70 = vld [vmem:[#allocation4 + $0xd0] sm:$0xff]
    %v71 = vld [vmem:[#allocation4 + $0xd8] sm:$0xff]
    %v72 = vld [vmem:[#allocation4 + $0xe0] sm:$0xff]
    %v73 = vld [vmem:[#allocation4 + $0xe8] sm:$0xff]
    %v74 = vld [vmem:[#allocation4 + $0xf0] sm:$0xff]
    %v75 = vld [vmem:[#allocation4 + $0xf8] sm:$0xff]
    %v76 = vld [vmem:[#allocation4 + $0x100] sm:$0xff]
    %v77 = vld [vmem:[#allocation4 + $0x108] sm:$0xff]
    %v78 = vld [vmem:[#allocation4 + $0x110] sm:$0xff]
    %v79 = vld [vmem:[#allocation4 + $0x118] sm:$0xff]
    %v80 = vld [vmem:[#allocation4 + $0x120] sm:$0xff]
    %v81 = vld [vmem:[#allocation4 + $0x128] sm:$0xff]
    %v82 = vld [vmem:[#allocation4 + $0x130] sm:$0xff]
    %v83 = vld [vmem:[#allocation4 + $0x138] sm:$0xff]
    %v84 = vld [vmem:[#allocation4 + $0x140] sm:$0xff]
    %v85 = vld [vmem:[#allocation4 + $0x148] sm:$0xff]
    %v86 = vld [vmem:[#allocation4 + $0x150] sm:$0xff]
    %v87 = vld [vmem:[#allocation4 + $0x158] sm:$0xff]
    %v88 = vld [vmem:[#allocation4 + $0x160] sm:$0xff]
    %v89 = vld [vmem:[#allocation4 + $0x168] sm:$0xff]
    %v90 = vld [vmem:[#allocation4 + $0x170] sm:$0xff]
    %v91 = vld [vmem:[#allocation4 + $0x178] sm:$0xff]
    %v92 = vld [vmem:[#allocation4 + $0x180] sm:$0xff]
    %v93 = vld [vmem:[#allocation4 + $0x188] sm:$0xff]
    %v94 = vld [vmem:[#allocation4 + $0x190] sm:$0xff]
    %v95 = vld [vmem:[#allocation4 + $0x198] sm:$0xff]
    %v96 = vld [vmem:[#allocation4 + $0x1a0] sm:$0xff]
    %v97 = vld [vmem:[#allocation4 + $0x1a8] sm:$0xff]
    %v98 = vld [vmem:[#allocation4 + $0x1b0] sm:$0xff]
    %v99 = vld [vmem:[#allocation4 + $0x1b8] sm:$0xff]
    %v100 = vld [vmem:[#allocation4 + $0x1c0] sm:$0xff]
    %v101 = vld [vmem:[#allocation4 + $0x1c8] sm:$0xff]
    %v102 = vld [vmem:[#allocation4 + $0x1d0] sm:$0xff]
    %v103 = vld [vmem:[#allocation4 + $0x1d8] sm:$0xff]
    %v104 = vld [vmem:[#allocation4 + $0x1e0] sm:$0xff]
    %v105 = vld [vmem:[#allocation4 + $0x1e8] sm:$0xff]
    %v106 = vld [vmem:[#allocation4 + $0x1f0] sm:$0xff]
    %v107 = vld [vmem:[#allocation4 + $0x1f8] sm:$0xff]
    %v108 = vld [vmem:[%s2] sm:$0xff]
    %109 = vmatprep.subr.mxu0 0.0
    %110 = vmatpush1.msra.mxu0 %v44
    %111 = vmatprep.subr.mxu0 0.0
    %112 = vmatpush1.msra.mxu0 %v45
    %113 = vmatprep.subr.mxu0 0.0
    %114 = vmatpush1.msra.mxu0 %v46
    %115 = vmatprep.subr.mxu0 0.0
    %116 = vmatpush1.msra.mxu0 %v47
    %117 = vmatprep.subr.mxu0 0.0
    %118 = vmatpush1.msra.mxu0 %v48
    %119 = vmatprep.subr.mxu0 0.0
    %120 = vmatpush1.msra.mxu0 %v49
    %121 = vmatprep.subr.mxu0 0.0
    %122 = vmatpush1.msra.mxu0 %v50
    %123 = vmatprep.subr.mxu0 0.0
    %124 = vmatpush1.msra.mxu0 %v51
    %125 = vmatprep.subr.mxu0 0.0
    %126 = vmatpush1.msra.mxu0 %v52
    %127 = vmatprep.subr.mxu0 0.0
    %128 = vmatpush1.msra.mxu0 %v53
    %129 = vmatprep.subr.mxu0 0.0
    %130 = vmatpush1.msra.mxu0 %v54
    %131 = vmatprep.subr.mxu0 0.0
    %132 = vmatpush1.msra.mxu0 %v55
    %133 = vmatprep.subr.mxu0 0.0
    %134 = vmatpush1.msra.mxu0 %v56
    %135 = vmatprep.subr.mxu0 0.0
    %136 = vmatpush1.msra.mxu0 %v57
    %137 = vmatprep.subr.mxu0 0.0
    %138 = vmatpush1.msra.mxu0 %v58
    %139 = vmatprep.subr.mxu0 0.0
    %140 = vmatpush1.msra.mxu0 %v59
    %141 = vmatprep.subr.mxu0 0.0
    %142 = vmatpush1.msra.mxu0 %v60
    %143 = vmatprep.subr.mxu0 0.0
    %144 = vmatpush1.msra.mxu0 %v61
    %145 = vmatprep.subr.mxu0 0.0
    %146 = vmatpush1.msra.mxu0 %v62
    %147 = vmatprep.subr.mxu0 0.0
    %148 = vmatpush1.msra.mxu0 %v63
    %149 = vmatprep.subr.mxu0 0.0
    %150 = vmatpush1.msra.mxu0 %v64
    %151 = vmatprep.subr.mxu0 0.0
    %152 = vmatpush1.msra.mxu0 %v65
    %153 = vmatprep.subr.mxu0 0.0
    %154 = vmatpush1.msra.mxu0 %v66
    %155 = vmatprep.subr.mxu0 0.0
    %156 = vmatpush1.msra.mxu0 %v67
    %157 = vmatprep.subr.mxu0 0.0
    %158 = vmatpush1.msra.mxu0 %v68
    %159 = vmatprep.subr.mxu0 0.0
    %160 = vmatpush1.msra.mxu0 %v69
    %161 = vmatprep.subr.mxu0 0.0
    %162 = vmatpush1.msra.mxu0 %v70
    %163 = vmatprep.subr.mxu0 0.0
    %164 = vmatpush1.msra.mxu0 %v71
    %165 = vmatprep.subr.mxu0 0.0
    %166 = vmatpush1.msra.mxu0 %v72
    %167 = vmatprep.subr.mxu0 0.0
    %168 = vmatpush1.msra.mxu0 %v73
    %169 = vmatprep.subr.mxu0 0.0
    %170 = vmatpush1.msra.mxu0 %v74
    %171 = vmatprep.subr.mxu0 0.0
    %172 = vmatpush1.msra.mxu0 %v75
    %173 = vmatprep.mubr.f32.mxu0 %v41
    %174 = vmatmul.mubr.f32.gmra.mrb[0].mxu0 %v40
    %v175 = vpop.f32.mrb[0].mxu0
    %v176 = vadd.f32 0.0, %v175
    %v177 = vpop.f32.mrb[0].mxu0
    %178 = vdwg.mxu0
    %179 = vmatprep.subr.mxu0 0.0
    %180 = vmatpush1.msra.mxu0 %v76
    %181 = vmatprep.subr.mxu0 0.0
    %182 = vmatpush1.msra.mxu0 %v77
    %183 = vmatprep.subr.mxu0 0.0
    %184 = vmatpush1.msra.mxu0 %v78
    %185 = vmatprep.subr.mxu0 0.0
    %186 = vmatpush1.msra.mxu0 %v79
    %187 = vmatprep.subr.mxu0 0.0
    %188 = vmatpush1.msra.mxu0 %v80
    %189 = vmatprep.subr.mxu0 0.0
    %190 = vmatpush1.msra.mxu0 %v81
    %191 = vmatprep.subr.mxu0 0.0
    %192 = vmatpush1.msra.mxu0 %v82
    %193 = vmatprep.subr.mxu0 0.0
    %194 = vmatpush1.msra.mxu0 %v83
    %195 = vmatprep.subr.mxu0 0.0
    %196 = vmatpush1.msra.mxu0 %v84
    %197 = vmatprep.subr.mxu0 0.0
    %198 = vmatpush1.msra.mxu0 %v85
    %199 = vmatprep.subr.mxu0 0.0
    %200 = vmatpush1.msra.mxu0 %v86
    %201 = vmatprep.subr.mxu0 0.0
    %202 = vmatpush1.msra.mxu0 %v87
    %203 = vmatprep.subr.mxu0 0.0
    %204 = vmatpush1.msra.mxu0 %v88
    %205 = vmatprep.subr.mxu0 0.0
    %206 = vmatpush1.msra.mxu0 %v89
    %207 = vmatprep.subr.mxu0 0.0
    %208 = vmatpush1.msra.mxu0 %v90
    %209 = vmatprep.subr.mxu0 0.0
    %210 = vmatpush1.msra.mxu0 %v91
    %211 = vmatprep.subr.mxu0 0.0
    %212 = vmatpush1.msra.mxu0 %v92
    %213 = vmatprep.subr.mxu0 0.0
    %214 = vmatpush1.msra.mxu0 %v93
    %215 = vmatprep.subr.mxu0 0.0
    %216 = vmatpush1.msra.mxu0 %v94
    %217 = vmatprep.subr.mxu0 0.0
    %218 = vmatpush1.msra.mxu0 %v95
    %219 = vmatprep.subr.mxu0 0.0
    %220 = vmatpush1.msra.mxu0 %v96
    %221 = vmatprep.subr.mxu0 0.0
    %222 = vmatpush1.msra.mxu0 %v97
    %223 = vmatprep.subr.mxu0 0.0
    %224 = vmatpush1.msra.mxu0 %v98
    %225 = vmatprep.subr.mxu0 0.0
    %226 = vmatpush1.msra.mxu0 %v99
    %227 = vmatprep.subr.mxu0 0.0
    %228 = vmatpush1.msra.mxu0 %v100
    %229 = vmatprep.subr.mxu0 0.0
    %230 = vmatpush1.msra.mxu0 %v101
    %231 = vmatprep.subr.mxu0 0.0
    %232 = vmatpush1.msra.mxu0 %v102
    %233 = vmatprep.subr.mxu0 0.0
    %234 = vmatpush1.msra.mxu0 %v103
    %235 = vmatprep.subr.mxu0 0.0
    %236 = vmatpush1.msra.mxu0 %v104
    %237 = vmatprep.subr.mxu0 0.0
    %238 = vmatpush1.msra.mxu0 %v105
    %239 = vmatprep.subr.mxu0 0.0
    %240 = vmatpush1.msra.mxu0 %v106
    %241 = vmatprep.subr.mxu0 0.0
    %242 = vmatpush1.msra.mxu0 %v107
    %243 = vmatprep.mubr.f32.mxu0 %v43
    %244 = vmatmul.mubr.f32.gmra.mrb[0].mxu0 %v42
    %v245 = vpop.f32.mrb[0].mxu0
    %v246 = vadd.f32 %v176, %v245
    %v247 = vpop.f32.mrb[0].mxu0
    %248 = vdwg.mxu0
    %249 = vmatprep.subr.mxu0 %v41
    %250 = vmatpush1.xpose.msra.mxu0 %v40
    %251 = vmatprep.subr.mxu0 0.0
    %252 = vmatpush1.xpose.msra.mxu0 0.0
    %253 = vmatprep.subr.mxu0 0.0
    %254 = vmatpush1.xpose.msra.mxu0 0.0
    %255 = vmatprep.subr.mxu0 0.0
    %256 = vmatpush1.xpose.msra.mxu0 0.0
    %257 = vmatprep.subr.mxu0 0.0
    %258 = vmatpush1.xpose.msra.mxu0 0.0
    %259 = vmatprep.subr.mxu0 0.0
    %260 = vmatpush1.xpose.msra.mxu0 0.0
    %261 = vmatprep.subr.mxu0 0.0
    %262 = vmatpush1.xpose.msra.mxu0 0.0
    %263 = vmatprep.subr.mxu0 0.0
    %264 = vmatpush1.xpose.msra.mxu0 0.0
    %265 = vmatprep.subr.mxu0 0.0
    %266 = vmatpush1.xpose.msra.mxu0 0.0
    %267 = vmatprep.subr.mxu0 0.0
    %268 = vmatpush1.xpose.msra.mxu0 0.0
    %269 = vmatprep.subr.mxu0 0.0
    %270 = vmatpush1.xpose.msra.mxu0 0.0
    %271 = vmatprep.subr.mxu0 0.0
    %272 = vmatpush1.xpose.msra.mxu0 0.0
    %273 = vmatprep.subr.mxu0 0.0
    %274 = vmatpush1.xpose.msra.mxu0 0.0
    %275 = vmatprep.subr.mxu0 0.0
    %276 = vmatpush1.xpose.msra.mxu0 0.0
    %277 = vmatprep.subr.mxu0 0.0
    %278 = vmatpush1.xpose.msra.mxu0 0.0
    %279 = vmatprep.subr.mxu0 0.0
    %280 = vmatpush1.xpose.msra.mxu0 0.0
    %281 = vmatprep.subr.mxu0 0.0
    %282 = vmatpush1.xpose.msra.mxu0 0.0
    %283 = vmatprep.subr.mxu0 0.0
    %284 = vmatpush1.xpose.msra.mxu0 0.0
    %285 = vmatprep.subr.mxu0 0.0
    %286 = vmatpush1.xpose.msra.mxu0 0.0
    %287 = vmatprep.subr.mxu0 0.0
    %288 = vmatpush1.xpose.msra.mxu0 0.0
    %289 = vmatprep.subr.mxu0 0.0
    %290 = vmatpush1.xpose.msra.mxu0 0.0
    %291 = vmatprep.subr.mxu0 0.0
    %292 = vmatpush1.xpose.msra.mxu0 0.0
    %293 = vmatprep.subr.mxu0 0.0
    %294 = vmatpush1.xpose.msra.mxu0 0.0
    %295 = vmatprep.subr.mxu0 0.0
    %296 = vmatpush1.xpose.msra.mxu0 0.0
    %297 = vmatprep.subr.mxu0 0.0
    %298 = vmatpush1.xpose.msra.mxu0 0.0
    %299 = vmatprep.subr.mxu0 0.0
    %300 = vmatpush1.xpose.msra.mxu0 0.0
    %301 = vmatprep.subr.mxu0 0.0
    %302 = vmatpush1.xpose.msra.mxu0 0.0
    %303 = vmatprep.subr.mxu0 0.0
    %304 = vmatpush1.xpose.msra.mxu0 0.0
    %305 = vmatprep.subr.mxu0 0.0
    %306 = vmatpush1.xpose.msra.mxu0 0.0
    %307 = vmatprep.subr.mxu0 0.0
    %308 = vmatpush1.xpose.msra.mxu0 0.0
    %309 = vmatprep.subr.mxu0 0.0
    %310 = vmatpush1.xpose.msra.mxu0 0.0
    %311 = vmatprep.subr.mxu0 0.0
    %312 = vmatpush1.xpose.msra.mxu0 0.0
    %313 = vmatprep.mubr.f32.mxu0 %v41
    %314 = vmatmul.mubr.f32.gmra.mrb[0].mxu0 %v40
    %v315 = vpop.f32.mrb[0].mxu0
    %v316 = vadd.f32 0.0, %v315
    %v317 = vpop.f32.mrb[0].mxu0
    %318 = vdwg.mxu0
    %319 = vmatprep.subr.mxu0 %v43
    %320 = vmatpush1.xpose.msra.mxu0 %v42
    %321 = vmatprep.subr.mxu0 0.0
    %322 = vmatpush1.xpose.msra.mxu0 0.0
    %323 = vmatprep.subr.mxu0 0.0
    %324 = vmatpush1.xpose.msra.mxu0 0.0
    %325 = vmatprep.subr.mxu0 0.0
    %326 = vmatpush1.xpose.msra.mxu0 0.0
    %327 = vmatprep.subr.mxu0 0.0
    %328 = vmatpush1.xpose.msra.mxu0 0.0
    %329 = vmatprep.subr.mxu0 0.0
    %330 = vmatpush1.xpose.msra.mxu0 0.0
    %331 = vmatprep.subr.mxu0 0.0
    %332 = vmatpush1.xpose.msra.mxu0 0.0
    %333 = vmatprep.subr.mxu0 0.0
    %334 = vmatpush1.xpose.msra.mxu0 0.0
    %335 = vmatprep.subr.mxu0 0.0
    %336 = vmatpush1.xpose.msra.mxu0 0.0
    %337 = vmatprep.subr.mxu0 0.0
    %338 = vmatpush1.xpose.msra.mxu0 0.0
    %339 = vmatprep.subr.mxu0 0.0
    %340 = vmatpush1.xpose.msra.mxu0 0.0
    %341 = vmatprep.subr.mxu0 0.0
    %342 = vmatpush1.xpose.msra.mxu0 0.0
    %343 = vmatprep.subr.mxu0 0.0
    %344 = vmatpush1.xpose.msra.mxu0 0.0
    %345 = vmatprep.subr.mxu0 0.0
    %346 = vmatpush1.xpose.msra.mxu0 0.0
    %347 = vmatprep.subr.mxu0 0.0
    %348 = vmatpush1.xpose.msra.mxu0 0.0
    %349 = vmatprep.subr.mxu0 0.0
    %350 = vmatpush1.xpose.msra.mxu0 0.0
    %351 = vmatprep.subr.mxu0 0.0
    %352 = vmatpush1.xpose.msra.mxu0 0.0
    %353 = vmatprep.subr.mxu0 0.0
    %354 = vmatpush1.xpose.msra.mxu0 0.0
    %355 = vmatprep.subr.mxu0 0.0
    %356 = vmatpush1.xpose.msra.mxu0 0.0
    %357 = vmatprep.subr.mxu0 0.0
    %358 = vmatpush1.xpose.msra.mxu0 0.0
    %359 = vmatprep.subr.mxu0 0.0
    %360 = vmatpush1.xpose.msra.mxu0 0.0
    %361 = vmatprep.subr.mxu0 0.0
    %362 = vmatpush1.xpose.msra.mxu0 0.0
    %363 = vmatprep.subr.mxu0 0.0
    %364 = vmatpush1.xpose.msra.mxu0 0.0
    %365 = vmatprep.subr.mxu0 0.0
    %366 = vmatpush1.xpose.msra.mxu0 0.0
    %367 = vmatprep.subr.mxu0 0.0
    %368 = vmatpush1.xpose.msra.mxu0 0.0
    %369 = vmatprep.subr.mxu0 0.0
    %370 = vmatpush1.xpose.msra.mxu0 0.0
    %371 = vmatprep.subr.mxu0 0.0
    %372 = vmatpush1.xpose.msra.mxu0 0.0
    %373 = vmatprep.subr.mxu0 0.0
    %374 = vmatpush1.xpose.msra.mxu0 0.0
    %375 = vmatprep.subr.mxu0 0.0
    %376 = vmatpush1.xpose.msra.mxu0 0.0
    %377 = vmatprep.subr.mxu0 0.0
    %378 = vmatpush1.xpose.msra.mxu0 0.0
    %379 = vmatprep.subr.mxu0 0.0
    %380 = vmatpush1.xpose.msra.mxu0 0.0
    %381 = vmatprep.subr.mxu0 0.0
    %382 = vmatpush1.xpose.msra.mxu0 0.0
    %383 = vmatprep.mubr.f32.mxu0 %v43
    %384 = vmatmul.mubr.f32.gmra.mrb[0].mxu0 %v42
    %v385 = vpop.f32.mrb[0].mxu0
    %v386 = vadd.f32 %v316, %v385
    %v387 = vpop.f32.mrb[0].mxu0
    %388 = vdwg.mxu0
    %v389 = vmul.f32 %v44, %v44
    %v390 = vmul.f32 %v45, %v45
    %v391 = vmul.f32 %v46, %v46
    %v392 = vmul.f32 %v47, %v47
    %v393 = vmul.f32 %v48, %v48
    %v394 = vmul.f32 %v49, %v49
    %v395 = vmul.f32 %v50, %v50
    %v396 = vmul.f32 %v51, %v51
    %v397 = vmul.f32 %v52, %v52
    %v398 = vmul.f32 %v53, %v53
    %v399 = vmul.f32 %v54, %v54
    %v400 = vmul.f32 %v55, %v55
    %v401 = vmul.f32 %v56, %v56
    %v402 = vmul.f32 %v57, %v57
    %v403 = vmul.f32 %v58, %v58
    %v404 = vmul.f32 %v59, %v59
    %v405 = vmul.f32 %v60, %v60
    %v406 = vmul.f32 %v61, %v61
    %v407 = vmul.f32 %v62, %v62
    %v408 = vmul.f32 %v63, %v63
    %v409 = vmul.f32 %v64, %v64
    %v410 = vmul.f32 %v65, %v65
    %v411 = vmul.f32 %v66, %v66
    %v412 = vmul.f32 %v67, %v67
    %v413 = vmul.f32 %v68, %v68
    %v414 = vmul.f32 %v69, %v69
    %v415 = vmul.f32 %v70, %v70
    %v416 = vmul.f32 %v71, %v71
    %v417 = vmul.f32 %v72, %v72
    %v418 = vmul.f32 %v73, %v73
    %v419 = vmul.f32 %v74, %v74
    %v420 = vmul.f32 %v75, %v75
    %v421 = vmul.f32 %v76, %v76
    %v422 = vmul.f32 %v77, %v77
    %v423 = vmul.f32 %v78, %v78
    %v424 = vmul.f32 %v79, %v79
    %v425 = vmul.f32 %v80, %v80
    %v426 = vmul.f32 %v81, %v81
    %v427 = vmul.f32 %v82, %v82
    %v428 = vmul.f32 %v83, %v83
    %v429 = vmul.f32 %v84, %v84
    %v430 = vmul.f32 %v85, %v85
    %v431 = vmul.f32 %v86, %v86
    %v432 = vmul.f32 %v87, %v87
    %v433 = vmul.f32 %v88, %v88
    %v434 = vmul.f32 %v89, %v89
    %v435 = vmul.f32 %v90, %v90
    %v436 = vmul.f32 %v91, %v91
    %v437 = vmul.f32 %v92, %v92
    %v438 = vmul.f32 %v93, %v93
    %v439 = vmul.f32 %v94, %v94
    %v440 = vmul.f32 %v95, %v95
    %v441 = vmul.f32 %v96, %v96
    %v442 = vmul.f32 %v97, %v97
    %v443 = vmul.f32 %v98, %v98
    %v444 = vmul.f32 %v99, %v99
    %v445 = vmul.f32 %v100, %v100
    %v446 = vmul.f32 %v101, %v101
    %v447 = vmul.f32 %v102, %v102
    %v448 = vmul.f32 %v103, %v103
    %v449 = vmul.f32 %v104, %v104
    %v450 = vmul.f32 %v105, %v105
    %v451 = vmul.f32 %v106, %v106
    %v452 = vmul.f32 %v107, %v107
    %v453 = vadd.f32 %v389, %v390
    %v454 = vadd.f32 %v453, %v391
    %v455 = vadd.f32 %v454, %v392
    %v456 = vadd.f32 %v455, %v393
    %v457 = vadd.f32 %v456, %v394
    %v458 = vadd.f32 %v457, %v395
    %v459 = vadd.f32 %v458, %v396
    %v460 = vadd.f32 %v459, %v397
    %v461 = vadd.f32 %v460, %v398
    %v462 = vadd.f32 %v461, %v399
    %v463 = vadd.f32 %v462, %v400
    %v464 = vadd.f32 %v463, %v401
    %v465 = vadd.f32 %v464, %v402
    %v466 = vadd.f32 %v465, %v403
    %v467 = vadd.f32 %v466, %v404
    %v468 = vadd.f32 %v467, %v405
    %v469 = vadd.f32 %v468, %v406
    %v470 = vadd.f32 %v469, %v407
    %v471 = vadd.f32 %v470, %v408
    %v472 = vadd.f32 %v471, %v409
    %v473 = vadd.f32 %v472, %v410
    %v474 = vadd.f32 %v473, %v411
    %v475 = vadd.f32 %v474, %v412
    %v476 = vadd.f32 %v475, %v413
    %v477 = vadd.f32 %v476, %v414
    %v478 = vadd.f32 %v477, %v415
    %v479 = vadd.f32 %v478, %v416
    %v480 = vadd.f32 %v479, %v417
    %v481 = vadd.f32 %v480, %v418
    %v482 = vadd.f32 %v481, %v419
    %v483 = vadd.f32 %v482, %v420
    %v484 = vadd.f32 %v483, %v421
    %v485 = vadd.f32 %v484, %v422
    %v486 = vadd.f32 %v485, %v423
    %v487 = vadd.f32 %v486, %v424
    %v488 = vadd.f32 %v487, %v425
    %v489 = vadd.f32 %v488, %v426
    %v490 = vadd.f32 %v489, %v427
    %v491 = vadd.f32 %v490, %v428
    %v492 = vadd.f32 %v491, %v429
    %v493 = vadd.f32 %v492, %v430
    %v494 = vadd.f32 %v493, %v431
    %v495 = vadd.f32 %v494, %v432
    %v496 = vadd.f32 %v495, %v433
    %v497 = vadd.f32 %v496, %v434
    %v498 = vadd.f32 %v497, %v435
    %v499 = vadd.f32 %v498, %v436
    %v500 = vadd.f32 %v499, %v437
    %v501 = vadd.f32 %v500, %v438
    %v502 = vadd.f32 %v501, %v439
    %v503 = vadd.f32 %v502, %v440
    %v504 = vadd.f32 %v503, %v441
    %v505 = vadd.f32 %v504, %v442
    %v506 = vadd.f32 %v505, %v443
    %v507 = vadd.f32 %v506, %v444
    %v508 = vadd.f32 %v507, %v445
    %v509 = vadd.f32 %v508, %v446
    %v510 = vadd.f32 %v509, %v447
    %v511 = vadd.f32 %v510, %v448
    %v512 = vadd.f32 %v511, %v449
    %v513 = vadd.f32 %v512, %v450
    %v514 = vadd.f32 %v513, %v451
    %v515 = vadd.f32 %v514, %v452
    %v516 = vrot.slane %v515, 4
    %v517 = vadd.f32 %v515, %v516
    %v518 = vrot.slane %v517, 2
    %v519 = vadd.f32 %v517, %v518
    %v520 = vrot.slane %v519, 1
    %v521 = vadd.f32 %v519, %v520
    %vm522 = vcmp.gt.f32.partialorder %v521, 0.0
    %v523 = vrsqrt.pop %v521
    %v524 = vsel %vm522, %v523, 0.0
    %v525 = vmul.f32 %v246, %v524
    %v526 = vmax.f32 %v525, -1.0
    %v527 = vmin.f32 %v526, 1.0
    %v528 = vlaneseq
    %v529 = vand.u32 %v528, 127
    %530 = vset.pattern.permute.xlu0 0
    %531 = vperm.xlu0 %530, %v108
    %v532 = vpop.permute.xlu0 %531
    %vm533 = vcmp.eq.s32.totalorder %v529, %v532
    %vm534 = vcmp.lt.s32.totalorder %v529, 98
    %v535 = vsub.f32 %v527, 2.0
    %v536 = vsel %vm533, %v535, %v527
    %v537 = vmul.f32 %v536, 10.0
    %v538 = vsel %vm534, %v537, -1e+30
    %539 = vmax.xlane.f32.xlu0 %v538
    %v540 = vpop.xlane.xlu0 %539
    %v541 = vsub.f32 %v538, %v540
    %v542 = vmul.f32 %v541, 1.442695
    %v543 = vpow.pop %v542
    %544 = vadd.xlane.f32.xlu0 %v543
    %v545 = vpop.xlane.xlu0 %544
    %v546 = vlog2.pop %v545
    %v547 = vmul.f32 %v546, 0.6931472
    %v548 = vadd.f32 %v547, %v540
    %v549 = vsel %vm533, %v537, 0.0
    %550 = vadd.xlane.f32.xlu0 %v549
    %v551 = vpop.xlane.xlu0 %550
    %v552 = vsub.f32 %v548, %v551
    %vm553 = vcmp.eq.f32.partialorder %v538, %v540
    %v554 = vsel %vm553, %v529, 128
    %v555 = vand.u32 %v554, 65535
    %v556 = vshra.s32 %v554, 16
    %v557 = vcvt.s32.f32 %v555
    %v558 = vcvt.s32.f32 %v556
    %559 = vmin.xlane.f32.xlu0 %v558
    %v560 = vpop.xlane.xlu0 %559
    %vm561 = vcmp.eq.f32.partialorder %v558, %v560
    %v562 = vsel %vm561, %v557, inf
    %563 = vmin.xlane.f32.xlu0 %v562
    %v564 = vpop.xlane.xlu0 %563
    %v565 = vcvt.f32.s32 %v564
    %v566 = vcvt.f32.s32 %v560
    %v567 = vshll.u32 %v566, 16
    %v568 = vadd.s32 %v567, %v565
    %vm569 = vcmp.eq.s32.totalorder %v568, %v108
    %v570 = vsel %vm569, 1, 0
    %v571 = vcvt.s32.f32 %v570
    %v572 = vsel %vm533, 1, 0
    %v573 = vcvt.s32.f32 %v572
    %574 = vmatprep.subr.mxu0 0.0
    %575 = vmatpush1.xpose.msra.mxu0 %v573
    %576 = vmatprep.subr.mxu0 0.0
    %577 = vmatpush1.xpose.msra.mxu0 0.0
    %578 = vmatprep.subr.mxu0 0.0
    %579 = vmatpush1.xpose.msra.mxu0 0.0
    %580 = vmatprep.subr.mxu0 0.0
    %581 = vmatpush1.xpose.msra.mxu0 0.0
    %582 = vmatprep.subr.mxu0 0.0
    %583 = vmatpush1.xpose.msra.mxu0 0.0
    %584 = vmatprep.subr.mxu0 0.0
    %585 = vmatpush1.xpose.msra.mxu0 0.0
    %586 = vmatprep.subr.mxu0 0.0
    %587 = vmatpush1.xpose.msra.mxu0 0.0
    %588 = vmatprep.subr.mxu0 0.0
    %589 = vmatpush1.xpose.msra.mxu0 0.0
    %590 = vmatprep.subr.mxu0 0.0
    %591 = vmatpush1.xpose.msra.mxu0 0.0
    %592 = vmatprep.subr.mxu0 0.0
    %593 = vmatpush1.xpose.msra.mxu0 0.0
    %594 = vmatprep.subr.mxu0 0.0
    %595 = vmatpush1.xpose.msra.mxu0 0.0
    %596 = vmatprep.subr.mxu0 0.0
    %597 = vmatpush1.xpose.msra.mxu0 0.0
    %598 = vmatprep.subr.mxu0 0.0
    %599 = vmatpush1.xpose.msra.mxu0 0.0
    %600 = vmatprep.subr.mxu0 0.0
    %601 = vmatpush1.xpose.msra.mxu0 0.0
    %602 = vmatprep.subr.mxu0 0.0
    %603 = vmatpush1.xpose.msra.mxu0 0.0
    %604 = vmatprep.subr.mxu0 0.0
    %605 = vmatpush1.xpose.msra.mxu0 0.0
    %606 = vmatprep.subr.mxu0 0.0
    %607 = vmatpush1.xpose.msra.mxu0 0.0
    %608 = vmatprep.subr.mxu0 0.0
    %609 = vmatpush1.xpose.msra.mxu0 0.0
    %610 = vmatprep.subr.mxu0 0.0
    %611 = vmatpush1.xpose.msra.mxu0 0.0
    %612 = vmatprep.subr.mxu0 0.0
    %613 = vmatpush1.xpose.msra.mxu0 0.0
    %614 = vmatprep.subr.mxu0 0.0
    %615 = vmatpush1.xpose.msra.mxu0 0.0
    %616 = vmatprep.subr.mxu0 0.0
    %617 = vmatpush1.xpose.msra.mxu0 0.0
    %618 = vmatprep.subr.mxu0 0.0
    %619 = vmatpush1.xpose.msra.mxu0 0.0
    %620 = vmatprep.subr.mxu0 0.0
    %621 = vmatpush1.xpose.msra.mxu0 0.0
    %622 = vmatprep.subr.mxu0 0.0
    %623 = vmatpush1.xpose.msra.mxu0 0.0
    %624 = vmatprep.subr.mxu0 0.0
    %625 = vmatpush1.xpose.msra.mxu0 0.0
    %626 = vmatprep.subr.mxu0 0.0
    %627 = vmatpush1.xpose.msra.mxu0 0.0
    %628 = vmatprep.subr.mxu0 0.0
    %629 = vmatpush1.xpose.msra.mxu0 0.0
    %630 = vmatprep.subr.mxu0 0.0
    %631 = vmatpush1.xpose.msra.mxu0 0.0
    %632 = vmatprep.subr.mxu0 0.0
    %633 = vmatpush1.xpose.msra.mxu0 0.0
    %634 = vmatprep.subr.mxu0 0.0
    %635 = vmatpush1.xpose.msra.mxu0 0.0
    %636 = vmatprep.subr.mxu0 0.0
    %637 = vmatpush1.xpose.msra.mxu0 0.0
    %638 = vmatprep.mubr.f32.mxu0 0.0
    %639 = vmatmul.mubr.f32.gmra.mrb[0].mxu0 %v573
    %v640 = vpop.f32.mrb[0].mxu0
    %v641 = vadd.f32 0.0, %v640
    %v642 = vpop.f32.mrb[0].mxu0
    %643 = vdwg.mxu0
    %vm644 = vcmp.lt.f32.partialorder %v386, 1.0
    %v645 = vsel %vm644, %v641, 0.0
    %v646 = vsub.f32 1.0, %v641
    %vm647 = vcmask 64512
    %v648 = vsel %vm647, %v645, 0.0
    %649 = vadd.xlane.f32.xlu0 %v648
    %v650 = vpop.xlane.xlu0 %649
    %v651 = vsel %vm647, %v646, 0.0
    %652 = vadd.xlane.f32.xlu0 %v651
    %v653 = vpop.xlane.xlu0 %652
    %v654 = vmul.f32 %v386, %v645
    %v655 = vsel %vm647, %v654, 0.0
    %656 = vadd.xlane.f32.xlu0 %v655
    %v657 = vpop.xlane.xlu0 %656
    %v658 = vmul.f32 %v386, %v646
    %v659 = vsel %vm647, %v658, 0.0
    %660 = vadd.xlane.f32.xlu0 %v659
    %v661 = vpop.xlane.xlu0 %660
    %v662 = vrcp.pop %v650
    %v663 = vmul.f32 %v657, %v662
    %v664 = vrcp.pop %v653
    %v665 = vmul.f32 %v661, %v664
    %v666 = vrot.slane %v552, 4
    %v667 = vadd.f32 %v552, %v666
    %v668 = vrot.slane %v667, 2
    %v669 = vadd.f32 %v667, %v668
    %v670 = vrot.slane %v669, 1
    %v671 = vadd.f32 %v669, %v670
    %v672 = vmul.f32 %v671, 0.125
    %vm673 = vcmask 7168
    %v674 = vsel %vm673, %v571, 0.0
    %v675 = vrot.slane %v674, 4
    %v676 = vadd.f32 %v674, %v675
    %v677 = vrot.slane %v676, 2
    %v678 = vadd.f32 %v676, %v677
    %v679 = vrot.slane %v678, 1
    %v680 = vadd.f32 %v678, %v679
    %v681 = vmul.f32 %v680, 0.125
    %v682 = vrot.slane %v663, 4
    %v683 = vadd.f32 %v663, %v682
    %v684 = vrot.slane %v683, 2
    %v685 = vadd.f32 %v683, %v684
    %v686 = vrot.slane %v685, 1
    %v687 = vadd.f32 %v685, %v686
    %v688 = vmul.f32 %v687, 0.125
    %v689 = vrot.slane %v665, 4
    %v690 = vadd.f32 %v665, %v689
    %v691 = vrot.slane %v690, 2
    %v692 = vadd.f32 %v690, %v691
    %v693 = vrot.slane %v692, 1
    %v694 = vadd.f32 %v692, %v693
    %v695 = vmul.f32 %v694, 0.125
    %vm696 = vcmp.eq.s32.totalorder %v529, 0
    %vm697 = vcmp.eq.s32.totalorder %v529, 1
    %vm698 = vcmp.eq.s32.totalorder %v529, 2
    %vm699 = vcmp.eq.s32.totalorder %v529, 3
    %v700 = vsel %vm699, %v695, 0.0
    %v701 = vsel %vm698, %v688, %v700
    %703 = vset.pattern.permute.xlu0 0
    %704 = vperm.xlu0 %703, %v681
    %v705 = vpop.permute.xlu0 %704
    %v707 = vsel %vm697, %v705, %v701
    %v708 = vsel %vm696, %v672, %v707
    %709 = vst [vmem:[%s3] sm:$0x1] %v708
    // Predicated region
    $region22: #{softmax_loss_forward.1} parent=1 // pred_check
      _
    $region23: #{softmax_loss_forward.1} parent=1 // pred_check_branch
      %711 = sbr.rel (0) target = $region25
    $region24: #{softmax_loss_forward.1} parent=1 // pred_region
      _
    $region25: #{softmax_loss_forward.1} parent=1 // pred_fallthru
      _
    // Predicated region
    $region26: #{softmax_loss_forward.1} parent=1 // pred_check
      _
    $region27: #{softmax_loss_forward.1} parent=1 // pred_check_branch
      %713 = sbr.rel (0) target = $region29
    $region28: #{softmax_loss_forward.1} parent=1 // pred_region
      _
    $region29: #{softmax_loss_forward.1} parent=1 // pred_fallthru
      _
    %714 = vsyncpa [#allocation3], 1
    %715 = vsyncpa [#allocation5], 1

</llo_original>
